<compile_context>
chip_gen: v6e
topology: v6e:2x2x1
jax: 0.10.0
libtpu: 0.0.40
codegen_flags: <defaults>
</compile_context>

<pallas_src>
import functools

import jax
import jax.numpy as jnp
from jax import lax
from jax.experimental import pallas as pl
from jax.experimental.pallas import tpu as pltpu


def _clip_text_embeddings_kernel(
    # scalar-prefetch (SMEM)
    tok_ids_ref,    # (B, S) int32
    pos_ids_ref,    # (B, S) int32  (ignored on the arange fast path)
    # inputs
    tok_tbl_hbm,    # (V, D) token embedding table, left in HBM
    pos_tbl_ref,    # (P, D) position embedding table, VMEM-resident across grid steps
    # output
    out_ref,        # (1, S, D) VMEM output block
    # scratch
    pos_slab,       # (S, D) VMEM (only used on the explicit-position_ids path)
    tok_sem,        # (1,) DMA semaphore shared by all token-row copies
    *, seq_len: int, iota_positions: bool,
):
    b = pl.program_id(0)

    # ---- 1) Issue all S token-row gather DMAs, straight into the output block.
    #         All copies share one semaphore -> a single aggregated wait below.
    def _issue(s, carry):
        tid = tok_ids_ref[b, s]
        pltpu.make_async_copy(
            tok_tbl_hbm.at[pl.ds(tid, 1), :],
            out_ref.at[0, pl.ds(s, 1), :],
            tok_sem.at[0],
        ).start()
        return carry

    lax.fori_loop(0, seq_len, _issue, None, unroll=max(1, min(8, seq_len)))

    # ---- 2) Position rows (overlaps the in-flight token DMAs; zero HBM traffic,
    #         the position table is VMEM resident).
    if not iota_positions:
        # Rare path: explicit position_ids -> per-row gather from the resident table.
        for s in range(seq_len):
            pid = pos_ids_ref[b, s]
            pos_slab[s:s + 1, :] = pos_tbl_ref[pl.ds(pid, 1), :]

    # ---- 3) Single aggregated wait for all S token-row DMAs
    #         (wait descriptor sized to the full (S, D) transfer).
    pltpu.make_async_copy(
        tok_tbl_hbm.at[pl.ds(0, seq_len), :],
        out_ref.at[0],
        tok_sem.at[0],
    ).wait()

    # ---- 4) Fused add: one full (S, D) in-place update of the output block.
    if iota_positions:
        out_ref[0] += pos_tbl_ref[pl.ds(0, seq_len), :]
    else:
        out_ref[0] += pos_slab[...]


def clip_text_embeddings(input_ids, token_embedding, position_embedding,
                         position_ids=None, inputs_embeds=None):
    """Pallas equivalent of CLIPTextEmbeddings.forward (input_ids path)."""
    if inputs_embeds is not None:
        # TODO(synk): inputs_embeds path (skip the token gather) not implemented; input_ids only.
        raise NotImplementedError("inputs_embeds path is not implemented")

    B, S = input_ids.shape
    V, D = token_embedding.shape
    P, D2 = position_embedding.shape
    assert D == D2, "token / position embedding dims must match"

    out_dtype = token_embedding.dtype
    position_embedding = position_embedding.astype(out_dtype)
    tok_ids = input_ids.astype(jnp.int32)

    iota_positions = position_ids is None
    if iota_positions:
        # Unused by the fast path; kept so both paths share one SMEM-prefetch layout.
        pos_ids = jnp.broadcast_to(jnp.arange(S, dtype=jnp.int32)[None, :], (B, S))
    else:
        pos_ids = jnp.broadcast_to(
            jnp.asarray(position_ids, dtype=jnp.int32).reshape(-1, S), (B, S))

    kernel = functools.partial(
        _clip_text_embeddings_kernel, seq_len=S, iota_positions=iota_positions)

    itemsize = jnp.dtype(out_dtype).itemsize
    cost = pl.CostEstimate(
        flops=B * S * D,
        transcendentals=0,
        bytes_accessed=(3 * B * S * D + P * D) * itemsize,
    )

    return pl.pallas_call(
        kernel,
        out_shape=jax.ShapeDtypeStruct((B, S, D), out_dtype),
        grid_spec=pltpu.PrefetchScalarGridSpec(
            num_scalar_prefetch=2,                 # tok_ids, pos_ids -> SMEM
            grid=(B,),
            in_specs=[
                pl.BlockSpec(memory_space=pl.ANY),                    # token table stays in HBM
                pl.BlockSpec((P, D), lambda b, tok, pos: (0, 0)),     # pos table VMEM-resident
            ],
            out_specs=pl.BlockSpec((1, S, D), lambda b, tok, pos: (b, 0, 0)),
            scratch_shapes=[
                pltpu.VMEM((S, D), out_dtype),      # pos slab (explicit-position_ids path only)
                pltpu.SemaphoreType.DMA((1,)),      # single shared token-gather semaphore
            ],
        ),
        compiler_params=pltpu.CompilerParams(
            dimension_semantics=("parallel",)),
        cost_estimate=cost,
    )(tok_ids, pos_ids, token_embedding, position_embedding)


def _reference(input_ids, token_embedding, position_embedding, position_ids=None):
    """Pure-JAX reference mirroring the PyTorch forward."""
    B, S = input_ids.shape
    if position_ids is None:
        position_ids = jnp.arange(S, dtype=jnp.int32)[None, :]
    return token_embedding[input_ids] + position_embedding[position_ids]


if __name__ == "__main__":
    # Small but layout-friendly demo shapes (D multiple of 128 lanes, S multiple of 8 sublanes).
    B, S, D = 2, 8, 128
    VOCAB, MAX_POS = 512, 16
    dtype = jnp.float32

    key = jax.random.PRNGKey(0)
    k_tok, k_pos, k_ids = jax.random.split(key, 3)

    token_embedding = (0.02 * jax.random.normal(k_tok, (VOCAB, D))).astype(dtype)
    position_embedding = (0.02 * jax.random.normal(k_pos, (MAX_POS, D))).astype(dtype)
    input_ids = jax.random.randint(k_ids, (B, S), 0, VOCAB, dtype=jnp.int32)

    out = clip_text_embeddings(input_ids, token_embedding, position_embedding)
    out = jax.block_until_ready(out)

    ref = _reference(input_ids, token_embedding, position_embedding)
    assert out.shape == (B, S, D)
    assert jnp.allclose(out, ref, atol=1e-6, rtol=1e-6), "mismatch vs reference"

    print("KERNEL_OK")
</pallas_src>

<mosaic_0001>
module attributes {stable_mosaic.version = 11 : i64} {
  func.func @_clip_text_embeddings_kernel(%arg0: i32, %arg1: memref<2x8xi32, #tpu.memory_space<smem>>, %arg2: memref<2x8xi32, #tpu.memory_space<smem>>, %arg3: memref<512x128xf32, #tpu.memory_space<any>>, %arg4: memref<16x128xf32, #tpu.memory_space<vmem>>, %arg5: memref<1x8x128xf32, #tpu.memory_space<vmem>>, %arg6: memref<8x128xf32, #tpu.memory_space<vmem>>, %arg7: memref<1x!tpu.dma_semaphore, #tpu.memory_space<semaphore_mem>>) attributes {dimension_semantics = [#tpu.dimension_semantics<parallel>], iteration_bounds = array<i64: 2>, scalar_prefetch = 2 : i64, scratch_operands = 2 : i64, tpu.core_type = #tpu.core_type<tc>, window_params = [{}, {pipeline_mode = #tpu.pipeline_mode<synchronous>, transform_indices = @transform_1, window_bounds = array<i64: 16, 128>}, {transform_indices = @transform_2, window_bounds = array<i64: 1, 8, 128>}]} {
    %c0_i32 = arith.constant 0 : i32
    %0 = arith.index_cast %arg0 : i32 to index
    %1 = arith.index_cast %c0_i32 : i32 to index
    %2 = memref.load %arg1[%0, %1] : memref<2x8xi32, #tpu.memory_space<smem>>
    %c0_i32_0 = arith.constant 0 : i32
    %c0_i32_1 = arith.constant 0 : i32
    %c0_i32_2 = arith.constant 0 : i32
    %3 = tpu.memref_slice %arg3[%2, %c0_i32_2] : memref<512x128xf32, #tpu.memory_space<any>> -> memref<1x128xf32, #tpu.memory_space<any>>
    %c0_i32_3 = arith.constant 0 : i32
    %4 = tpu.memref_slice %arg5[%c0_i32_0, %c0_i32, %c0_i32_3] : memref<1x8x128xf32, #tpu.memory_space<vmem>> -> memref<1x1x128xf32, #tpu.memory_space<vmem>>
    %5 = tpu.memref_squeeze %4 : memref<1x1x128xf32, #tpu.memory_space<vmem>> -> memref<1x128xf32, #tpu.memory_space<vmem>>
    %6 = tpu.memref_slice %arg7[%c0_i32_1] : memref<1x!tpu.dma_semaphore, #tpu.memory_space<semaphore_mem>> -> memref<1x!tpu.dma_semaphore, #tpu.memory_space<semaphore_mem>>
    %7 = tpu.memref_squeeze %6 : memref<1x!tpu.dma_semaphore, #tpu.memory_space<semaphore_mem>> -> memref<!tpu.dma_semaphore, #tpu.memory_space<semaphore_mem>>
    tpu.enqueue_dma source(%3 : memref<1x128xf32, #tpu.memory_space<any>>) target(%5 : memref<1x128xf32, #tpu.memory_space<vmem>>) target_semaphore(%7 : memref<!tpu.dma_semaphore, #tpu.memory_space<semaphore_mem>>)
    %c1_i32 = arith.constant 1 : i32
    %8 = arith.index_cast %arg0 : i32 to index
    %9 = arith.index_cast %c1_i32 : i32 to index
    %10 = memref.load %arg1[%8, %9] : memref<2x8xi32, #tpu.memory_space<smem>>
    %c0_i32_4 = arith.constant 0 : i32
    %c0_i32_5 = arith.constant 0 : i32
    %c0_i32_6 = arith.constant 0 : i32
    %11 = tpu.memref_slice %arg3[%10, %c0_i32_6] : memref<512x128xf32, #tpu.memory_space<any>> -> memref<1x128xf32, #tpu.memory_space<any>>
    %c0_i32_7 = arith.constant 0 : i32
    %12 = tpu.memref_slice %arg5[%c0_i32_4, %c1_i32, %c0_i32_7] : memref<1x8x128xf32, #tpu.memory_space<vmem>> -> memref<1x1x128xf32, #tpu.memory_space<vmem>>
    %13 = tpu.memref_squeeze %12 : memref<1x1x128xf32, #tpu.memory_space<vmem>> -> memref<1x128xf32, #tpu.memory_space<vmem>>
    %14 = tpu.memref_slice %arg7[%c0_i32_5] : memref<1x!tpu.dma_semaphore, #tpu.memory_space<semaphore_mem>> -> memref<1x!tpu.dma_semaphore, #tpu.memory_space<semaphore_mem>>
    %15 = tpu.memref_squeeze %14 : memref<1x!tpu.dma_semaphore, #tpu.memory_space<semaphore_mem>> -> memref<!tpu.dma_semaphore, #tpu.memory_space<semaphore_mem>>
    tpu.enqueue_dma source(%11 : memref<1x128xf32, #tpu.memory_space<any>>) target(%13 : memref<1x128xf32, #tpu.memory_space<vmem>>) target_semaphore(%15 : memref<!tpu.dma_semaphore, #tpu.memory_space<semaphore_mem>>)
    %c2_i32 = arith.constant 2 : i32
    %16 = arith.index_cast %arg0 : i32 to index
    %17 = arith.index_cast %c2_i32 : i32 to index
    %18 = memref.load %arg1[%16, %17] : memref<2x8xi32, #tpu.memory_space<smem>>
    %c0_i32_8 = arith.constant 0 : i32
    %c0_i32_9 = arith.constant 0 : i32
    %c0_i32_10 = arith.constant 0 : i32
    %19 = tpu.memref_slice %arg3[%18, %c0_i32_10] : memref<512x128xf32, #tpu.memory_space<any>> -> memref<1x128xf32, #tpu.memory_space<any>>
    %c0_i32_11 = arith.constant 0 : i32
    %20 = tpu.memref_slice %arg5[%c0_i32_8, %c2_i32, %c0_i32_11] : memref<1x8x128xf32, #tpu.memory_space<vmem>> -> memref<1x1x128xf32, #tpu.memory_space<vmem>>
    %21 = tpu.memref_squeeze %20 : memref<1x1x128xf32, #tpu.memory_space<vmem>> -> memref<1x128xf32, #tpu.memory_space<vmem>>
    %22 = tpu.memref_slice %arg7[%c0_i32_9] : memref<1x!tpu.dma_semaphore, #tpu.memory_space<semaphore_mem>> -> memref<1x!tpu.dma_semaphore, #tpu.memory_space<semaphore_mem>>
    %23 = tpu.memref_squeeze %22 : memref<1x!tpu.dma_semaphore, #tpu.memory_space<semaphore_mem>> -> memref<!tpu.dma_semaphore, #tpu.memory_space<semaphore_mem>>
    tpu.enqueue_dma source(%19 : memref<1x128xf32, #tpu.memory_space<any>>) target(%21 : memref<1x128xf32, #tpu.memory_space<vmem>>) target_semaphore(%23 : memref<!tpu.dma_semaphore, #tpu.memory_space<semaphore_mem>>)
    %c3_i32 = arith.constant 3 : i32
    %24 = arith.index_cast %arg0 : i32 to index
    %25 = arith.index_cast %c3_i32 : i32 to index
    %26 = memref.load %arg1[%24, %25] : memref<2x8xi32, #tpu.memory_space<smem>>
    %c0_i32_12 = arith.constant 0 : i32
    %c0_i32_13 = arith.constant 0 : i32
    %c0_i32_14 = arith.constant 0 : i32
    %27 = tpu.memref_slice %arg3[%26, %c0_i32_14] : memref<512x128xf32, #tpu.memory_space<any>> -> memref<1x128xf32, #tpu.memory_space<any>>
    %c0_i32_15 = arith.constant 0 : i32
    %28 = tpu.memref_slice %arg5[%c0_i32_12, %c3_i32, %c0_i32_15] : memref<1x8x128xf32, #tpu.memory_space<vmem>> -> memref<1x1x128xf32, #tpu.memory_space<vmem>>
    %29 = tpu.memref_squeeze %28 : memref<1x1x128xf32, #tpu.memory_space<vmem>> -> memref<1x128xf32, #tpu.memory_space<vmem>>
    %30 = tpu.memref_slice %arg7[%c0_i32_13] : memref<1x!tpu.dma_semaphore, #tpu.memory_space<semaphore_mem>> -> memref<1x!tpu.dma_semaphore, #tpu.memory_space<semaphore_mem>>
    %31 = tpu.memref_squeeze %30 : memref<1x!tpu.dma_semaphore, #tpu.memory_space<semaphore_mem>> -> memref<!tpu.dma_semaphore, #tpu.memory_space<semaphore_mem>>
    tpu.enqueue_dma source(%27 : memref<1x128xf32, #tpu.memory_space<any>>) target(%29 : memref<1x128xf32, #tpu.memory_space<vmem>>) target_semaphore(%31 : memref<!tpu.dma_semaphore, #tpu.memory_space<semaphore_mem>>)
    %c4_i32 = arith.constant 4 : i32
    %32 = arith.index_cast %arg0 : i32 to index
    %33 = arith.index_cast %c4_i32 : i32 to index
    %34 = memref.load %arg1[%32, %33] : memref<2x8xi32, #tpu.memory_space<smem>>
    %c0_i32_16 = arith.constant 0 : i32
    %c0_i32_17 = arith.constant 0 : i32
    %c0_i32_18 = arith.constant 0 : i32
    %35 = tpu.memref_slice %arg3[%34, %c0_i32_18] : memref<512x128xf32, #tpu.memory_space<any>> -> memref<1x128xf32, #tpu.memory_space<any>>
    %c0_i32_19 = arith.constant 0 : i32
    %36 = tpu.memref_slice %arg5[%c0_i32_16, %c4_i32, %c0_i32_19] : memref<1x8x128xf32, #tpu.memory_space<vmem>> -> memref<1x1x128xf32, #tpu.memory_space<vmem>>
    %37 = tpu.memref_squeeze %36 : memref<1x1x128xf32, #tpu.memory_space<vmem>> -> memref<1x128xf32, #tpu.memory_space<vmem>>
    %38 = tpu.memref_slice %arg7[%c0_i32_17] : memref<1x!tpu.dma_semaphore, #tpu.memory_space<semaphore_mem>> -> memref<1x!tpu.dma_semaphore, #tpu.memory_space<semaphore_mem>>
    %39 = tpu.memref_squeeze %38 : memref<1x!tpu.dma_semaphore, #tpu.memory_space<semaphore_mem>> -> memref<!tpu.dma_semaphore, #tpu.memory_space<semaphore_mem>>
    tpu.enqueue_dma source(%35 : memref<1x128xf32, #tpu.memory_space<any>>) target(%37 : memref<1x128xf32, #tpu.memory_space<vmem>>) target_semaphore(%39 : memref<!tpu.dma_semaphore, #tpu.memory_space<semaphore_mem>>)
    %c5_i32 = arith.constant 5 : i32
    %40 = arith.index_cast %arg0 : i32 to index
    %41 = arith.index_cast %c5_i32 : i32 to index
    %42 = memref.load %arg1[%40, %41] : memref<2x8xi32, #tpu.memory_space<smem>>
    %c0_i32_20 = arith.constant 0 : i32
    %c0_i32_21 = arith.constant 0 : i32
    %c0_i32_22 = arith.constant 0 : i32
    %43 = tpu.memref_slice %arg3[%42, %c0_i32_22] : memref<512x128xf32, #tpu.memory_space<any>> -> memref<1x128xf32, #tpu.memory_space<any>>
    %c0_i32_23 = arith.constant 0 : i32
    %44 = tpu.memref_slice %arg5[%c0_i32_20, %c5_i32, %c0_i32_23] : memref<1x8x128xf32, #tpu.memory_space<vmem>> -> memref<1x1x128xf32, #tpu.memory_space<vmem>>
    %45 = tpu.memref_squeeze %44 : memref<1x1x128xf32, #tpu.memory_space<vmem>> -> memref<1x128xf32, #tpu.memory_space<vmem>>
    %46 = tpu.memref_slice %arg7[%c0_i32_21] : memref<1x!tpu.dma_semaphore, #tpu.memory_space<semaphore_mem>> -> memref<1x!tpu.dma_semaphore, #tpu.memory_space<semaphore_mem>>
    %47 = tpu.memref_squeeze %46 : memref<1x!tpu.dma_semaphore, #tpu.memory_space<semaphore_mem>> -> memref<!tpu.dma_semaphore, #tpu.memory_space<semaphore_mem>>
    tpu.enqueue_dma source(%43 : memref<1x128xf32, #tpu.memory_space<any>>) target(%45 : memref<1x128xf32, #tpu.memory_space<vmem>>) target_semaphore(%47 : memref<!tpu.dma_semaphore, #tpu.memory_space<semaphore_mem>>)
    %c6_i32 = arith.constant 6 : i32
    %48 = arith.index_cast %arg0 : i32 to index
    %49 = arith.index_cast %c6_i32 : i32 to index
    %50 = memref.load %arg1[%48, %49] : memref<2x8xi32, #tpu.memory_space<smem>>
    %c0_i32_24 = arith.constant 0 : i32
    %c0_i32_25 = arith.constant 0 : i32
    %c0_i32_26 = arith.constant 0 : i32
    %51 = tpu.memref_slice %arg3[%50, %c0_i32_26] : memref<512x128xf32, #tpu.memory_space<any>> -> memref<1x128xf32, #tpu.memory_space<any>>
    %c0_i32_27 = arith.constant 0 : i32
    %52 = tpu.memref_slice %arg5[%c0_i32_24, %c6_i32, %c0_i32_27] : memref<1x8x128xf32, #tpu.memory_space<vmem>> -> memref<1x1x128xf32, #tpu.memory_space<vmem>>
    %53 = tpu.memref_squeeze %52 : memref<1x1x128xf32, #tpu.memory_space<vmem>> -> memref<1x128xf32, #tpu.memory_space<vmem>>
    %54 = tpu.memref_slice %arg7[%c0_i32_25] : memref<1x!tpu.dma_semaphore, #tpu.memory_space<semaphore_mem>> -> memref<1x!tpu.dma_semaphore, #tpu.memory_space<semaphore_mem>>
    %55 = tpu.memref_squeeze %54 : memref<1x!tpu.dma_semaphore, #tpu.memory_space<semaphore_mem>> -> memref<!tpu.dma_semaphore, #tpu.memory_space<semaphore_mem>>
    tpu.enqueue_dma source(%51 : memref<1x128xf32, #tpu.memory_space<any>>) target(%53 : memref<1x128xf32, #tpu.memory_space<vmem>>) target_semaphore(%55 : memref<!tpu.dma_semaphore, #tpu.memory_space<semaphore_mem>>)
    %c7_i32 = arith.constant 7 : i32
    %56 = arith.index_cast %arg0 : i32 to index
    %57 = arith.index_cast %c7_i32 : i32 to index
    %58 = memref.load %arg1[%56, %57] : memref<2x8xi32, #tpu.memory_space<smem>>
    %c0_i32_28 = arith.constant 0 : i32
    %c0_i32_29 = arith.constant 0 : i32
    %c0_i32_30 = arith.constant 0 : i32
    %59 = tpu.memref_slice %arg3[%58, %c0_i32_30] : memref<512x128xf32, #tpu.memory_space<any>> -> memref<1x128xf32, #tpu.memory_space<any>>
    %c0_i32_31 = arith.constant 0 : i32
    %60 = tpu.memref_slice %arg5[%c0_i32_28, %c7_i32, %c0_i32_31] : memref<1x8x128xf32, #tpu.memory_space<vmem>> -> memref<1x1x128xf32, #tpu.memory_space<vmem>>
    %61 = tpu.memref_squeeze %60 : memref<1x1x128xf32, #tpu.memory_space<vmem>> -> memref<1x128xf32, #tpu.memory_space<vmem>>
    %62 = tpu.memref_slice %arg7[%c0_i32_29] : memref<1x!tpu.dma_semaphore, #tpu.memory_space<semaphore_mem>> -> memref<1x!tpu.dma_semaphore, #tpu.memory_space<semaphore_mem>>
    %63 = tpu.memref_squeeze %62 : memref<1x!tpu.dma_semaphore, #tpu.memory_space<semaphore_mem>> -> memref<!tpu.dma_semaphore, #tpu.memory_space<semaphore_mem>>
    tpu.enqueue_dma source(%59 : memref<1x128xf32, #tpu.memory_space<any>>) target(%61 : memref<1x128xf32, #tpu.memory_space<vmem>>) target_semaphore(%63 : memref<!tpu.dma_semaphore, #tpu.memory_space<semaphore_mem>>)
    %c8_i32 = arith.constant 8 : i32
    %c0_i32_32 = arith.constant 0 : i32
    %c0_i32_33 = arith.constant 0 : i32
    %c0_i32_34 = arith.constant 0 : i32
    %c0_i32_35 = arith.constant 0 : i32
    %64 = tpu.memref_slice %arg3[%c0_i32_34, %c0_i32_35] : memref<512x128xf32, #tpu.memory_space<any>> -> memref<8x128xf32, #tpu.memory_space<any>>
    %c0_i32_36 = arith.constant 0 : i32
    %c0_i32_37 = arith.constant 0 : i32
    %65 = tpu.memref_slice %arg5[%c0_i32_32, %c0_i32_36, %c0_i32_37] : memref<1x8x128xf32, #tpu.memory_space<vmem>> -> memref<1x8x128xf32, #tpu.memory_space<vmem>>
    %66 = tpu.memref_squeeze %65 : memref<1x8x128xf32, #tpu.memory_space<vmem>> -> memref<8x128xf32, #tpu.memory_space<vmem>>
    %67 = tpu.memref_slice %arg7[%c0_i32_33] : memref<1x!tpu.dma_semaphore, #tpu.memory_space<semaphore_mem>> -> memref<1x!tpu.dma_semaphore, #tpu.memory_space<semaphore_mem>>
    %68 = tpu.memref_squeeze %67 : memref<1x!tpu.dma_semaphore, #tpu.memory_space<semaphore_mem>> -> memref<!tpu.dma_semaphore, #tpu.memory_space<semaphore_mem>>
    tpu.wait_dma2 semaphore(%68 : memref<!tpu.dma_semaphore, #tpu.memory_space<semaphore_mem>>) src(%64 : memref<8x128xf32, #tpu.memory_space<any>>) dst(%66 : memref<8x128xf32, #tpu.memory_space<vmem>>)
    %c0 = arith.constant 0 : index
    %c0_38 = arith.constant 0 : index
    %c0_39 = arith.constant 0 : index
    %69 = vector.load %arg5[%c0, %c0_38, %c0_39] : memref<1x8x128xf32, #tpu.memory_space<vmem>>, vector<1x8x128xf32>
    %70 = vector.shape_cast %69 : vector<1x8x128xf32> to vector<8x128xf32>
    %c0_40 = arith.constant 0 : index
    %c0_41 = arith.constant 0 : index
    %71 = vector.load %arg4[%c0_40, %c0_41] : memref<16x128xf32, #tpu.memory_space<vmem>>, vector<8x128xf32>
    %72 = arith.addf %70, %71 : vector<8x128xf32>
    %c0_42 = arith.constant 0 : index
    %c0_43 = arith.constant 0 : index
    %c0_44 = arith.constant 0 : index
    %73 = vector.load %arg5[%c0_42, %c0_43, %c0_44] : memref<1x8x128xf32, #tpu.memory_space<vmem>>, vector<1x8x128xf32>
    %74 = vector.shape_cast %73 : vector<1x8x128xf32> to vector<8x128xf32>
    %75 = vector.shape_cast %72 : vector<8x128xf32> to vector<1x8x128xf32>
    tpu.vector_store %arg5[%c0_42, %c0_43, %c0_44], %75 {strides = array<i32>} : memref<1x8x128xf32, #tpu.memory_space<vmem>>, vector<1x8x128xf32>,
    return
  }
  func.func @transform_1(%arg0: i32, %arg1: memref<2x8xi32, #tpu.memory_space<smem>>, %arg2: memref<2x8xi32, #tpu.memory_space<smem>>) -> (i32, i32) {
    %c0_i32 = arith.constant 0 : i32
    %c0_i32_0 = arith.constant 0 : i32
    %c0_i32_1 = arith.constant 0 : i32
    return %c0_i32, %c0_i32_0 : i32, i32
  }
  func.func @transform_2(%arg0: i32, %arg1: memref<2x8xi32, #tpu.memory_space<smem>>, %arg2: memref<2x8xi32, #tpu.memory_space<smem>>) -> (i32, i32, i32) {
    %c0_i32 = arith.constant 0 : i32
    %c0_i32_0 = arith.constant 0 : i32
    %c0_i32_1 = arith.constant 0 : i32
    return %arg0, %c0_i32, %c0_i32_0 : i32, i32, i32
  }
}

</mosaic_0001>

<llo_original>
// kernel: tpu_custom_call.1
$region0: #{tpu_custom_call.1}
  #allocation0 [shape = 'u32[]', space=smem, size = 0x4, offset = 0x4, fixed_abs, tag = 'smem constant byte address 0x4 - core index']
  #allocation1 [shape = 'u32[144,128]{1,0:T(1,128)}', space=vmem, size = 0x12000, scoped, tag = 'internal scratch']
  #allocation2 [shape = 'f32[8,128]{1,0:T(8,128)}', space=vmem, size = 0x1000, scoped, tag = 'scratch operand']
  #allocation3 [shape = 's32[1]{0}', space=sflag, size = 0x4, scoped, tag = 'scratch operand']
  #allocation4 [shape = 's32[1]{0}', space=sflag, size = 0x4, scoped, tag = 'scoped memory for tpu_custom_call.1']
  #allocation5 [shape = 'u8[1024]{0}', space=smem, size = 0x400, scoped, tag = 'prefetched SMEM operand 0']
  #allocation6 [shape = 'u8[1024]{0}', space=smem, size = 0x400, scoped, tag = 'prefetched SMEM operand 1']
  #allocation11 [shape = 's32[]', space=sflag, size = 0x4, offset = 0, fixed_abs, tag = 'sflag constant byte address 0x0 - dummy sync flag']
  #allocation12 [shape = 's32[]', space=sflag, size = 0x4, offset = 0, fixed_abs, tag = 'sflag constant byte address 0x0 - dummy sync flag']
  #allocation13 [shape = 'u32[]', space=smem, size = 0x4, offset = 0x44, fixed_abs, tag = 'smem constant byte address 0x44 - assertion arg 0']
  #allocation14 [shape = 'u32[]', space=smem, size = 0x4, offset = 0x48, fixed_abs, tag = 'smem constant byte address 0x48 - assertion arg 1']
  #allocation15 [shape = 's32[]', space=sflag, size = 0x4, offset = 0, fixed_abs, tag = 'sflag constant byte address 0x0 - dummy sync flag']
  #allocation16 [shape = 's32[]', space=sflag, size = 0x4, offset = 0, fixed_abs, tag = 'sflag constant byte address 0x0 - dummy sync flag']
  #allocation17 [shape = 's32[]', space=sflag, size = 0x4, offset = 0, fixed_abs, tag = 'sflag constant byte address 0x0 - dummy sync flag']
  #allocation18 [shape = 's32[]', space=sflag, size = 0x4, offset = 0, fixed_abs, tag = 'sflag constant byte address 0x0 - dummy sync flag']
  #allocation19 [shape = 's32[]', space=sflag, size = 0x4, offset = 0, fixed_abs, tag = 'sflag constant byte address 0x0 - dummy sync flag']
  #allocation20 [shape = 's32[]', space=sflag, size = 0x4, offset = 0, fixed_abs, tag = 'sflag constant byte address 0x0 - dummy sync flag']
  #allocation21 [shape = 's32[]', space=sflag, size = 0x4, offset = 0, fixed_abs, tag = 'sflag constant byte address 0x0 - dummy sync flag']
  #allocation22 [shape = 's32[]', space=sflag, size = 0x4, offset = 0, fixed_abs, tag = 'sflag constant byte address 0x0 - dummy sync flag']
  #allocation23 [shape = 's32[]', space=sflag, size = 0x4, offset = 0, fixed_abs, tag = 'sflag constant byte address 0x0 - dummy sync flag']
  #allocation24 [shape = 's32[]', space=sflag, size = 0x4, offset = 0, fixed_abs, tag = 'sflag constant byte address 0x0 - dummy sync flag']
  #allocation25 [shape = 's32[]', space=sflag, size = 0x4, offset = 0, fixed_abs, tag = 'sflag constant byte address 0x0 - dummy sync flag']
  #allocation26 [shape = 's32[]', space=sflag, size = 0x4, offset = 0, fixed_abs, tag = 'sflag constant byte address 0x0 - dummy sync flag']
  #allocation27 [shape = 's32[]', space=sflag, size = 0x4, offset = 0, fixed_abs, tag = 'sflag constant byte address 0x0 - dummy sync flag']
  #allocation28 [shape = 's32[]', space=sflag, size = 0x4, offset = 0, fixed_abs, tag = 'sflag constant byte address 0x0 - dummy sync flag']
  %s0 = inlined_call_operand.hbm [shape: s32[2,8], index: 0, kind: input, shape index: {}]
  %s1 = inlined_call_operand.hbm [shape: s32[2,8], index: 1, kind: input, shape index: {}]
  %s2 = inlined_call_operand.hbm [shape: f32[512,128], index: 2, kind: input, shape index: {}]
  %s3 = inlined_call_operand.hbm [shape: f32[16,128], index: 3, kind: input, shape index: {}]
  %s4 = inlined_call_operand.hbm [shape: f32[2,8,128], index: 4, kind: output, shape index: {}]
  %s5 = sld [smem:[#allocation0]]
  $region73: #{tpu_custom_call.1} parent=0
    _
  %s7 = ssub.s32 1, %s5
  %s8 = scalar_select 0, %s7, %s5
  %10 = dma.hbm_to_smem %s0, 32, [#allocation5], [#allocation4]
  %12 = dma.hbm_to_smem %s1, 32, [#allocation6], [#allocation4]
  %13 = dma.done [#allocation4], 64
  %14 = sfence
  $region1: #{tpu_custom_call.1} parent=0
    #allocation7 [shape = 'u8[8192]{0}', space=vmem, size = 0x2000, scoped, tag = 'input window, operand 3, single buffered']
    #allocation8 [shape = 's32[2]{0}', space=sflag, size = 0x8, scoped, tag = 'scoped memory for tpu_custom_call.1']
    #allocation9 [shape = 's32[2]{0}', space=sflag, size = 0x8, scoped, tag = 'scoped memory for tpu_custom_call.1']
    #allocation10 [shape = 'u8[8192]{0}', space=vmem, size = 0x2000, scoped, tag = 'output window, operand 0']
    %15 = vsyncpa [#allocation8], 0
    %16 = vsyncpa [#allocation9], 0
    %s17 = scalar_lea.sflag [#allocation9], 1
    %18 = vsyncpa %s17, 0
    loop: start=0, step=1, limit=4
    $region2: #{tpu_custom_call.1} parent=1 // loop_pre_header
      _
    $region3: #{tpu_custom_call.1} parent=1 // loop_header
      %s20 = sphi 0, %s24
      %p21 = scmp.ge.s32.totalorder %s20, 4
      %s28 = sphi 0, %s28
      %s30 = sphi 0, %s28
      %s31 = sphi 0, %s30
      %s45 = sphi 0, %s31
      %s51 = sphi 0, %s53
      %s54 = sphi 0, %s51
      %s55 = sphi 0, %s54
      %s71 = sphi 0, %s55
    $region4: #{tpu_custom_call.1} parent=1 // loop_header_branch
      %23 = sbr.rel (%p21) target = $region8
    $region5: #{tpu_custom_call.1} parent=1 // loop_body
      %s25 = ssub.s32 %s20, 1
      %s26 = ssub.s32 %s20, 2
      %s27 = sadd.s32 %s20, 1
      %s29 = sadd.s32 %s28, 1
      %p32 = scmp.eq.s32.totalorder %s20, 1
      %p33 = scmp.ne.s32.totalorder %s28, %s30
      %p34 = scmp.eq.s32.totalorder %s20, 0
      %p35 = por %p33, %p34
      %p36 = scmp.ne.s32.totalorder %s28, %s30
      %p37 = scmp.eq.s32.totalorder %s25, 1
      %p38 = por %p36, %p37
      %p39 = scmp.ne.s32.totalorder %s30, %s31
      %p40 = scmp.eq.s32.totalorder %s25, 0
      %p41 = por %p39, %p40
      %p42 = scmp.ne.s32.totalorder %s30, %s31
      %p43 = scmp.eq.s32.totalorder %s26, 1
      %p44 = por %p42, %p43
      %p46 = scmp.ne.s32.totalorder %s31, %s45
      %p47 = scmp.eq.s32.totalorder %s26, 0
      %p48 = por %p46, %p47
      %s49 = ssub.s32 %s20, %s27
      %p50 = scmp.eq.s32.totalorder %s49, 0
      %s52 = sadd.s32 %s51, 1
      %s53 = scalar_select %p50, %s51, %s52
      %p56 = pneg %p50
      %p57 = scmp.eq.s32.totalorder %s20, 1
      %p58 = por %p56, %p57
      %p59 = scmp.ne.s32.totalorder %s51, %s54
      %p60 = scmp.eq.s32.totalorder %s20, 0
      %p61 = por %p59, %p60
      %p62 = scmp.ne.s32.totalorder %s51, %s54
      %p63 = scmp.eq.s32.totalorder %s25, 1
      %p64 = por %p62, %p63
      %p65 = scmp.ne.s32.totalorder %s54, %s55
      %p66 = scmp.eq.s32.totalorder %s25, 0
      %p67 = por %p65, %p66
      %p68 = scmp.ne.s32.totalorder %s54, %s55
      %p69 = scmp.eq.s32.totalorder %s26, 1
      %p70 = por %p68, %p69
      %p72 = scmp.ne.s32.totalorder %s55, %s71
      %p73 = scmp.eq.s32.totalorder %s26, 0
      %p74 = por %p72, %p73
      %p75 = scmp.le.s32.totalorder 1, %s20
      %p76 = scmp.lt.s32.totalorder %s20, 3
      %p77 = pnand %p75, %p76
      %p78 = pneg %p77
      // Predicated region
      $region9: #{tpu_custom_call.1} parent=5 // pred_check
        _
      $region10: #{tpu_custom_call.1} parent=5 // pred_check_branch
        %80 = sbr.rel (%p77) target = $region12
      $region11: #{tpu_custom_call.1} parent=5 // pred_region
        %s81 = ssub.s32 %s20, 1
        // Predicated region
        $region13: #{tpu_custom_call.1} parent=11 // pred_check
          %p82 = pneg %p41
        $region14: #{tpu_custom_call.1} parent=11 // pred_check_branch
          %84 = sbr.rel (%p82) target = $region16
        $region15: #{tpu_custom_call.1} parent=11 // pred_region
          %s86 = ssub.s32 256, 256
          %87 = vsyncadd [#allocation8], %s86
          %s88 = sshll.u32 [#allocation7], 4
          %s89 = int_to_ptr.vmem [resolvable:$true] %s88
          %94 = dma.hbm_to_vmem [thread:$0]  %s3, 256, %s89, [#allocation8], 128, 128, 8
        $region16: #{tpu_custom_call.1} parent=11 // pred_fallthru
          _
      $region12: #{tpu_custom_call.1} parent=5 // pred_fallthru
        _
      %p95 = scmp.lt.s32.totalorder %s20, 2
      // Predicated region
      $region17: #{tpu_custom_call.1} parent=5 // pred_check
        %p96 = pneg %p95
      $region18: #{tpu_custom_call.1} parent=5 // pred_check_branch
        %98 = sbr.rel (%p96) target = $region20
      $region19: #{tpu_custom_call.1} parent=5 // pred_region
        _
      $region20: #{tpu_custom_call.1} parent=5 // pred_fallthru
        _
      %p99 = scmp.le.s32.totalorder 1, %s20
      %p100 = scmp.lt.s32.totalorder %s20, 3
      %p101 = pnand %p99, %p100
      %p102 = pneg %p101
      // Predicated region
      $region21: #{tpu_custom_call.1} parent=5 // pred_check
        _
      $region22: #{tpu_custom_call.1} parent=5 // pred_check_branch
        %104 = sbr.rel (%p101) target = $region24
      $region23: #{tpu_custom_call.1} parent=5 // pred_region
        %s105 = ssub.s32 %s20, 1
        // Predicated region
        $region25: #{tpu_custom_call.1} parent=23 // pred_check
          %p106 = pneg %p41
        $region26: #{tpu_custom_call.1} parent=23 // pred_check_branch
          %108 = sbr.rel (%p106) target = $region28
        $region27: #{tpu_custom_call.1} parent=23 // pred_region
          %109 = dma.done [#allocation8], 256
        $region28: #{tpu_custom_call.1} parent=23 // pred_fallthru
          _
        %p110 = pneg %p41
        %p111 = pneg %p38
        %p112 = pneg %p67
        %p113 = pneg %p64
        %s114 = sand.u32 %s54, 1
        %s115 = scalar_lea.sflag [#allocation9], %s114
        %s116 = sand.u32 %s54, 1
        %s117 = smul.addr %s116, 8
        %s118 = scalar_lea.vmem [#allocation10], %s117
        %s119 = smul.u32 %s25, 128
        %s120 = sld [smem:[#allocation5 + %s119]]
        %s121 = smul.addr %s120, 16
        %s122 = scalar_lea.hbm %s2, %s121
        // Predicated region
        $region29: #{tpu_custom_call.1} parent=23 // pred_check
          _
        $region30: #{tpu_custom_call.1} parent=23 // pred_check_branch
          %124 = sbr.rel target = $region32
        $region31: #{tpu_custom_call.1} parent=23 // pred_region
          %125 = sst [smem:[#allocation13]] [#allocation12]
          %126 = sst [smem:[#allocation14]] [#allocation11]
        $region32: #{tpu_custom_call.1} parent=23 // pred_fallthru
          _
        %128 = shalt.err (0)
        %s130 = sshll.u32 %s118, 4
        %s131 = int_to_ptr.vmem [resolvable:$true] %s130
        %133 = dma.hbm_to_vmem [thread:$0]  %s122, 16, %s131, [#allocation3]
        %s134 = sadd.s32 %s119, 1
        %s135 = sld [smem:[#allocation5 + %s134]]
        %s136 = smul.addr %s135, 16
        %s137 = scalar_lea.hbm %s2, %s136
        %s138 = scalar_lea.vmem %s118, 1 [#allocation10]
        // Predicated region
        $region33: #{tpu_custom_call.1} parent=23 // pred_check
          _
        $region34: #{tpu_custom_call.1} parent=23 // pred_check_branch
          %140 = sbr.rel target = $region36
        $region35: #{tpu_custom_call.1} parent=23 // pred_region
          %141 = sst [smem:[#allocation13]] [#allocation16]
          %142 = sst [smem:[#allocation14]] [#allocation15]
        $region36: #{tpu_custom_call.1} parent=23 // pred_fallthru
          _
        %144 = shalt.err (0)
        %s146 = sshll.u32 %s138, 4
        %s147 = int_to_ptr.vmem [resolvable:$true] %s146
        %149 = dma.hbm_to_vmem [thread:$0]  %s137, 16, %s147, [#allocation3]
        %s150 = sadd.s32 %s119, 2
        %s151 = sld [smem:[#allocation5 + %s150]]
        %s152 = smul.addr %s151, 16
        %s153 = scalar_lea.hbm %s2, %s152
        %s154 = scalar_lea.vmem %s118, 2 [#allocation10]
        // Predicated region
        $region37: #{tpu_custom_call.1} parent=23 // pred_check
          _
        $region38: #{tpu_custom_call.1} parent=23 // pred_check_branch
          %156 = sbr.rel target = $region40
        $region39: #{tpu_custom_call.1} parent=23 // pred_region
          %157 = sst [smem:[#allocation13]] [#allocation18]
          %158 = sst [smem:[#allocation14]] [#allocation17]
        $region40: #{tpu_custom_call.1} parent=23 // pred_fallthru
          _
        %160 = shalt.err (0)
        %s162 = sshll.u32 %s154, 4
        %s163 = int_to_ptr.vmem [resolvable:$true] %s162
        %165 = dma.hbm_to_vmem [thread:$0]  %s153, 16, %s163, [#allocation3]
        %s166 = sadd.s32 %s119, 3
        %s167 = sld [smem:[#allocation5 + %s166]]
        %s168 = smul.addr %s167, 16
        %s169 = scalar_lea.hbm %s2, %s168
        %s170 = scalar_lea.vmem %s118, 3 [#allocation10]
        // Predicated region
        $region41: #{tpu_custom_call.1} parent=23 // pred_check
          _
        $region42: #{tpu_custom_call.1} parent=23 // pred_check_branch
          %172 = sbr.rel target = $region44
        $region43: #{tpu_custom_call.1} parent=23 // pred_region
          %173 = sst [smem:[#allocation13]] [#allocation20]
          %174 = sst [smem:[#allocation14]] [#allocation19]
        $region44: #{tpu_custom_call.1} parent=23 // pred_fallthru
          _
        %176 = shalt.err (0)
        %s178 = sshll.u32 %s170, 4
        %s179 = int_to_ptr.vmem [resolvable:$true] %s178
        %181 = dma.hbm_to_vmem [thread:$0]  %s169, 16, %s179, [#allocation3]
        %s182 = sadd.s32 %s119, 4
        %s183 = sld [smem:[#allocation5 + %s182]]
        %s184 = smul.addr %s183, 16
        %s185 = scalar_lea.hbm %s2, %s184
        %s186 = scalar_lea.vmem %s118, 4 [#allocation10]
        // Predicated region
        $region45: #{tpu_custom_call.1} parent=23 // pred_check
          _
        $region46: #{tpu_custom_call.1} parent=23 // pred_check_branch
          %188 = sbr.rel target = $region48
        $region47: #{tpu_custom_call.1} parent=23 // pred_region
          %189 = sst [smem:[#allocation13]] [#allocation22]
          %190 = sst [smem:[#allocation14]] [#allocation21]
        $region48: #{tpu_custom_call.1} parent=23 // pred_fallthru
          _
        %192 = shalt.err (0)
        %s194 = sshll.u32 %s186, 4
        %s195 = int_to_ptr.vmem [resolvable:$true] %s194
        %197 = dma.hbm_to_vmem [thread:$0]  %s185, 16, %s195, [#allocation3]
        %s198 = sadd.s32 %s119, 5
        %s199 = sld [smem:[#allocation5 + %s198]]
        %s200 = smul.addr %s199, 16
        %s201 = scalar_lea.hbm %s2, %s200
        %s202 = scalar_lea.vmem %s118, 5 [#allocation10]
        // Predicated region
        $region49: #{tpu_custom_call.1} parent=23 // pred_check
          _
        $region50: #{tpu_custom_call.1} parent=23 // pred_check_branch
          %204 = sbr.rel target = $region52
        $region51: #{tpu_custom_call.1} parent=23 // pred_region
          %205 = sst [smem:[#allocation13]] [#allocation24]
          %206 = sst [smem:[#allocation14]] [#allocation23]
        $region52: #{tpu_custom_call.1} parent=23 // pred_fallthru
          _
        %208 = shalt.err (0)
        %s210 = sshll.u32 %s202, 4
        %s211 = int_to_ptr.vmem [resolvable:$true] %s210
        %213 = dma.hbm_to_vmem [thread:$0]  %s201, 16, %s211, [#allocation3]
        %s214 = sadd.s32 %s119, 6
        %s215 = sld [smem:[#allocation5 + %s214]]
        %s216 = smul.addr %s215, 16
        %s217 = scalar_lea.hbm %s2, %s216
        %s218 = scalar_lea.vmem %s118, 6 [#allocation10]
        // Predicated region
        $region53: #{tpu_custom_call.1} parent=23 // pred_check
          _
        $region54: #{tpu_custom_call.1} parent=23 // pred_check_branch
          %220 = sbr.rel target = $region56
        $region55: #{tpu_custom_call.1} parent=23 // pred_region
          %221 = sst [smem:[#allocation13]] [#allocation26]
          %222 = sst [smem:[#allocation14]] [#allocation25]
        $region56: #{tpu_custom_call.1} parent=23 // pred_fallthru
          _
        %224 = shalt.err (0)
        %s226 = sshll.u32 %s218, 4
        %s227 = int_to_ptr.vmem [resolvable:$true] %s226
        %229 = dma.hbm_to_vmem [thread:$0]  %s217, 16, %s227, [#allocation3]
        %s230 = sadd.s32 %s119, 7
        %s231 = sld [smem:[#allocation5 + %s230]]
        %s232 = smul.addr %s231, 16
        %s233 = scalar_lea.hbm %s2, %s232
        %s234 = scalar_lea.vmem %s118, 7 [#allocation10]
        // Predicated region
        $region57: #{tpu_custom_call.1} parent=23 // pred_check
          _
        $region58: #{tpu_custom_call.1} parent=23 // pred_check_branch
          %236 = sbr.rel target = $region60
        $region59: #{tpu_custom_call.1} parent=23 // pred_region
          %237 = sst [smem:[#allocation13]] [#allocation28]
          %238 = sst [smem:[#allocation14]] [#allocation27]
        $region60: #{tpu_custom_call.1} parent=23 // pred_fallthru
          _
        %240 = shalt.err (0)
        %s242 = sshll.u32 %s234, 4
        %s243 = int_to_ptr.vmem [resolvable:$true] %s242
        %245 = dma.hbm_to_vmem [thread:$0]  %s233, 16, %s243, [#allocation3]
        %s246 = smul.u32 8, 1
        %s247 = sshll.u32 %s246, 4
        %248 = dma.done [#allocation3], %s247
        %v249 = vld [vmem:[%s118] sm:$0xff]
        %v250 = vld [vmem:[#allocation7] sm:$0xff]
        %v251 = vadd.f32 %v249, %v250
        %252 = vst [vmem:[%s118] sm:$0xff] %v251
        %s253 = sand.u32 %s54, 1
        %s254 = scalar_lea.sflag [#allocation9], %s253
        %s255 = sand.u32 %s54, 1
        %s256 = smul.addr %s255, 8
        %s257 = scalar_lea.vmem [#allocation10], %s256
        // Predicated region
        $region61: #{tpu_custom_call.1} parent=23 // pred_check
          %p258 = pneg %p64
        $region62: #{tpu_custom_call.1} parent=23 // pred_check_branch
          %260 = sbr.rel (%p258) target = $region64
        $region63: #{tpu_custom_call.1} parent=23 // pred_region
          %s262 = ssub.s32 128, 128
          %263 = vsyncadd %s254, %s262
          %s264 = smul.addr %s25, 128
          %s265 = scalar_lea.hbm %s4, %s264
          %s267 = sshll.u32 %s257, 4
          %s268 = int_to_ptr.vmem [resolvable:$true] %s267
          %270 = dma.vmem_to_hbm [thread:$0]  %s268, 128, %s265, %s254
        $region64: #{tpu_custom_call.1} parent=23 // pred_fallthru
          _
      $region24: #{tpu_custom_call.1} parent=5 // pred_fallthru
        _
      %p271 = scmp.le.s32.totalorder 2, %s20
      // Predicated region
      $region65: #{tpu_custom_call.1} parent=5 // pred_check
        %p272 = pneg %p271
      $region66: #{tpu_custom_call.1} parent=5 // pred_check_branch
        %274 = sbr.rel (%p272) target = $region68
      $region67: #{tpu_custom_call.1} parent=5 // pred_region
        %s275 = ssub.s32 %s20, 2
        // Predicated region
        $region69: #{tpu_custom_call.1} parent=67 // pred_check
          %p276 = pneg %p70
        $region70: #{tpu_custom_call.1} parent=67 // pred_check_branch
          %278 = sbr.rel (%p276) target = $region72
        $region71: #{tpu_custom_call.1} parent=67 // pred_region
          %s279 = sand.u32 %s55, 1
          %s280 = scalar_lea.sflag [#allocation9], %s279
          %s281 = sand.u32 %s55, 1
          %s282 = smul.addr %s281, 8
          %s283 = scalar_lea.vmem [#allocation10], %s282
          %284 = dma.done %s280, 128
        $region72: #{tpu_custom_call.1} parent=67 // pred_fallthru
          _
      $region68: #{tpu_custom_call.1} parent=5 // pred_fallthru
        _
    $region6: #{tpu_custom_call.1} parent=1 // loop_footer
      %s24 = sadd.s32 1, %s20
    $region7: #{tpu_custom_call.1} parent=1 // loop_footer_branch
      %19 = sbr.rel target = $region3
    $region8: #{tpu_custom_call.1} parent=1 // loop_exit
      _
    %285 = vsyncpa [#allocation8], 1
    %s286 = scalar_lea.sflag [#allocation8], 1
    %287 = vsyncpa %s286, 1
    %288 = vsyncpa [#allocation9], 1
    %s289 = scalar_lea.sflag [#allocation9], 1
    %290 = vsyncpa %s289, 1
  %291 = vsyncmov [#allocation3]
  %s292 = vpop.sfrf %291
  %p293 = scmp.eq.s32.totalorder %s292, 0
  %p294 = pneg %p293
  %296 = shalt.err (%p294)

</llo_original>
